<compile_context>
chip_gen: v7x
topology: tpu7x:2x2x1
jax: 0.10.0
libtpu: 0.0.40
codegen_flags: <defaults>
</compile_context>

<pallas_src>
import jax
import jax.numpy as jnp
from jax.experimental import pallas as pl
from jax.experimental.pallas import tpu as pltpu


# ---------------------------------------------------------------------------
# Tiling helpers
# ---------------------------------------------------------------------------
def _round_up(x, m):
    return ((x + m - 1) // m) * m


def _vmem_limit_bytes():
    """VMEM limit sized to the actual chip (v7x: 64 MiB, v5e/v6e: 128 MiB)."""
    cap = None
    try:
        info = pltpu.get_tpu_info()
        cap = getattr(info, "vmem_capacity_bytes", None)
    except Exception:
        cap = None
    if not cap:
        cap = 64 << 20                       # v7x-safe assumption (smallest VMEM)
    limit = (int(cap) * 3) // 4              # leave headroom for Mosaic internals
    return max(32 << 20, min(limit, 96 << 20))


def _choose_block_n(N, C, itemsize, vmem_limit):
    """Largest lane-dense block_n whose tile fits the per-step VMEM budget.

    Per-instance VMEM cost is round_up(C, 128) * itemsize (lane dim is padded
    to 128).  The budget (vmem_limit/8) leaves room for the double-buffered
    input plus the f32 intermediates of the entropy math.
    """
    if N <= 128:
        return N                             # one full-extent block
    per_n_vmem = _round_up(C, 128) * itemsize
    tile_budget = vmem_limit // 8            # ~6 MiB (v7x) .. ~12 MiB (v5e/v6e)
    cap_rows = max(128, (tile_budget // per_n_vmem) // 128 * 128)
    n_pad = _round_up(N, 128)
    block_n = min(cap_rows, n_pad)
    # Guarantee >= 2 grid steps along N so the "parallel" axis can use both
    # TensorCores on v7x.
    if block_n >= n_pad:
        block_n = _round_up(n_pad // 2, 128)
    return block_n


# ---------------------------------------------------------------------------
# Kernel bodies
# ---------------------------------------------------------------------------
def _make_kernel_classes_on_lanes(inv_b):
    """Tile (block_n, C): class axis on lanes. Use when C >= 128."""

    def kernel(x_ref, out_ref, acc_ref):
        b = pl.program_id(1)

        @pl.when(b == 0)
        def _():
            acc_ref[...] = jnp.zeros_like(acc_ref)

        x = x_ref[...].astype(jnp.float32)                 # (block_n, C)
        m = jnp.max(x, axis=-1, keepdims=True)             # (block_n, 1)
        xm = x - m
        ex = jnp.exp(xm)
        z = jnp.sum(ex, axis=-1, keepdims=True)            # (block_n, 1)
        s = jnp.sum(ex * xm, axis=-1, keepdims=True)       # (block_n, 1)
        ent = jnp.log(z) - s * pl.reciprocal(z)            # exact reciprocal
        acc_ref[...] += ent

        @pl.when(b == pl.num_programs(1) - 1)
        def _():
            out_ref[...] = acc_ref[...] * inv_b            # mean over B

    return kernel


def _make_kernel_instances_on_lanes(inv_b):
    """Tile (block_n, C), C < 128: transpose on-chip so N sits on lanes."""

    def kernel(x_ref, out_ref, acc_ref):
        b = pl.program_id(1)

        @pl.when(b == 0)
        def _():
            acc_ref[...] = jnp.zeros_like(acc_ref)

        x = x_ref[...].astype(jnp.float32)                 # (block_n, C)
        xt = x.T                                           # (C, block_n), XLU, on-chip
        m = jnp.max(xt, axis=0, keepdims=True)             # (1, block_n)
        xm = xt - m
        ex = jnp.exp(xm)                                   # lane-dense EUP
        z = jnp.sum(ex, axis=0, keepdims=True)             # (1, block_n)
        s = jnp.sum(ex * xm, axis=0, keepdims=True)        # (1, block_n)
        ent = jnp.log(z) - s * pl.reciprocal(z)
        acc_ref[...] += ent

        @pl.when(b == pl.num_programs(1) - 1)
        def _():
            out_ref[...] = acc_ref[...] * inv_b            # mean over B

    return kernel


# ---------------------------------------------------------------------------
# pallas_call wrapper
# ---------------------------------------------------------------------------
def _pallas_instance_entropy(prob, block_n, classes_on_lanes, vmem_limit):
    B, N, C = prob.shape
    n_blocks = pl.cdiv(N, block_n)
    inv_b = 1.0 / float(B)

    if classes_on_lanes:
        kernel = _make_kernel_classes_on_lanes(inv_b)
        out_shape = jax.ShapeDtypeStruct((N, 1), jnp.float32)
        out_spec = pl.BlockSpec((block_n, 1), lambda i, b: (i, 0))
        acc_shape = pltpu.VMEM((block_n, 1), jnp.float32)
    else:
        kernel = _make_kernel_instances_on_lanes(inv_b)
        out_shape = jax.ShapeDtypeStruct((1, N), jnp.float32)
        out_spec = pl.BlockSpec((1, block_n), lambda i, b: (0, i))
        acc_shape = pltpu.VMEM((1, block_n), jnp.float32)

    # One batch element per step (leading axis squeezed), block_n instances,
    # full class axis.  Contiguous HBM slabs, no extra passes.
    in_spec = pl.BlockSpec((None, block_n, C), lambda i, b: (b, i, 0))

    out = pl.pallas_call(
        kernel,
        out_shape=out_shape,
        grid_spec=pltpu.PrefetchScalarGridSpec(
            num_scalar_prefetch=0,
            grid=(n_blocks, B),                      # reduction axis (B) last
            in_specs=[in_spec],
            out_specs=out_spec,
            scratch_shapes=[acc_shape],
        ),
        compiler_params=pltpu.CompilerParams(
            dimension_semantics=("parallel", "arbitrary"),
            vmem_limit_bytes=vmem_limit,
        ),
    )(prob)
    return out.reshape(N)


def instance_entropy_loss(prob, block_n=None):
    """Pallas implementation of InstanceEntropyLoss.forward.

    prob: (B, N, C) float array (f32 or bf16; math is done in f32).
    Returns (loss, instance_entropy): scalar f32 and (N,) f32.
    """
    B, N, C = prob.shape
    itemsize = jnp.dtype(prob.dtype).itemsize
    vmem_limit = _vmem_limit_bytes()
    if block_n is None:
        block_n = _choose_block_n(N, C, itemsize, vmem_limit)

    if C >= 128:
        inst = _pallas_instance_entropy(prob, block_n, True, vmem_limit)
    else:
        try:
            # Preferred small-C path: in-kernel transpose, lane-dense compute.
            inst = _pallas_instance_entropy(prob, block_n, False, vmem_limit)
        except Exception:
            # Safety net: natural layout works for any C (just lane-padded).
            inst = _pallas_instance_entropy(prob, block_n, True, vmem_limit)

    loss = jnp.mean(inst)                      # trailing mean over N in XLA
    return loss, inst


# ---------------------------------------------------------------------------
# Reference + tests
# ---------------------------------------------------------------------------
def _reference(prob):
    x = prob.astype(jnp.float32)
    p = jax.nn.softmax(x, axis=2)
    logp = jax.nn.log_softmax(x, axis=2)
    ent = -jnp.sum(p * logp, axis=2)
    inst = jnp.mean(ent, axis=0)
    return jnp.mean(inst), inst


def _check(prob):
    loss, inst = instance_entropy_loss(prob)
    jax.block_until_ready((loss, inst))
    ref_loss, ref_inst = _reference(prob)
    assert jnp.allclose(loss, ref_loss, atol=1e-5, rtol=1e-5), (loss, ref_loss)
    assert jnp.allclose(inst, ref_inst, atol=1e-5, rtol=1e-5)


if __name__ == "__main__":
    key = jax.random.PRNGKey(0)
    k1, k2, k3 = jax.random.split(key, 3)

    # Case 1: small C (< 128) -> instances-on-lanes kernel (in-kernel transpose).
    _check(jax.random.normal(k1, (2, 8, 16), dtype=jnp.float32))

    # Case 2: C >= 128 -> classes-on-lanes kernel, multi-step grid on both axes.
    _check(jax.random.normal(k2, (2, 256, 128), dtype=jnp.float32))

    # Case 3: uneven N (partial final 128-block handled by boundary masking).
    _check(jax.random.normal(k3, (3, 200, 16), dtype=jnp.float32))

    print("KERNEL_OK")
</pallas_src>

<mosaic_0001>
module attributes {stable_mosaic.version = 11 : i64} {
  func.func @kernel(%arg0: i32, %arg1: i32, %arg2: memref<1x8x16xf32, #tpu.memory_space<vmem>>, %arg3: memref<1x8xf32, #tpu.memory_space<vmem>>, %arg4: memref<1x8xf32, #tpu.memory_space<vmem>>) attributes {dimension_semantics = [#tpu.dimension_semantics<parallel>, #tpu.dimension_semantics<arbitrary>], iteration_bounds = array<i64: 1, 2>, scalar_prefetch = 0 : i64, scratch_operands = 1 : i64, tpu.core_type = #tpu.core_type<tc>, window_params = [{transform_indices = @transform_0, window_bounds = array<i64: 1, 8, 16>}, {transform_indices = @transform_1, window_bounds = array<i64: 1, 8>}]} {
    %c0_i32 = arith.constant 0 : i32
    %0 = arith.cmpi eq, %arg1, %c0_i32 : i32
    %1 = arith.extui %0 : i1 to i32
    %c0_i32_0 = arith.constant 0 : i32
    %2 = arith.cmpi ne, %1, %c0_i32_0 : i32
    scf.if %2 {
      %cst_10 = arith.constant 0.000000e+00 : f32
      %26 = vector.broadcast %cst_10 : f32 to vector<1x8xf32>
      %c0_11 = arith.constant 0 : index
      %c0_12 = arith.constant 0 : index
      %27 = vector.load %arg4[%c0_11, %c0_12] : memref<1x8xf32, #tpu.memory_space<vmem>>, vector<1x8xf32>
      tpu.vector_store %arg4[%c0_11, %c0_12], %26 {strides = array<i32>} : memref<1x8xf32, #tpu.memory_space<vmem>>, vector<1x8xf32>,
    } else {
    }
    %c0 = arith.constant 0 : index
    %c0_1 = arith.constant 0 : index
    %c0_2 = arith.constant 0 : index
    %3 = vector.load %arg2[%c0, %c0_1, %c0_2] : memref<1x8x16xf32, #tpu.memory_space<vmem>>, vector<1x8x16xf32>
    %4 = vector.shape_cast %3 : vector<1x8x16xf32> to vector<8x16xf32>
    %5 = tpu.transpose %4, [1, 0] : vector<8x16xf32> -> vector<16x8xf32>
    %cst = arith.constant dense<0xFF800000> : vector<8xf32>
    %6 = vector.multi_reduction <maximumf>, %5, %cst [0] : vector<16x8xf32> to vector<8xf32>
    %7 = vector.shape_cast %6 : vector<8xf32> to vector<1x8xf32>
    %8 = vector.broadcast %7 : vector<1x8xf32> to vector<16x8xf32>
    %9 = arith.subf %5, %8 : vector<16x8xf32>
    %10 = math.exp %9 : vector<16x8xf32>
    %cst_3 = arith.constant dense<0.000000e+00> : vector<8xf32>
    %11 = vector.multi_reduction <add>, %10, %cst_3 [0] : vector<16x8xf32> to vector<8xf32>
    %12 = vector.shape_cast %11 : vector<8xf32> to vector<1x8xf32>
    %13 = arith.mulf %10, %9 : vector<16x8xf32>
    %cst_4 = arith.constant dense<0.000000e+00> : vector<8xf32>
    %14 = vector.multi_reduction <add>, %13, %cst_4 [0] : vector<16x8xf32> to vector<8xf32>
    %15 = vector.shape_cast %14 : vector<8xf32> to vector<1x8xf32>
    %16 = math.log %12 : vector<1x8xf32>
    %17 = tpu.reciprocal %12 : vector<1x8xf32> -> vector<1x8xf32>
    %18 = arith.mulf %15, %17 : vector<1x8xf32>
    %19 = arith.subf %16, %18 : vector<1x8xf32>
    %c0_5 = arith.constant 0 : index
    %c0_6 = arith.constant 0 : index
    %20 = vector.load %arg4[%c0_5, %c0_6] : memref<1x8xf32, #tpu.memory_space<vmem>>, vector<1x8xf32>
    %21 = arith.addf %20, %19 : vector<1x8xf32>
    %c0_7 = arith.constant 0 : index
    %c0_8 = arith.constant 0 : index
    %22 = vector.load %arg4[%c0_7, %c0_8] : memref<1x8xf32, #tpu.memory_space<vmem>>, vector<1x8xf32>
    tpu.vector_store %arg4[%c0_7, %c0_8], %21 {strides = array<i32>} : memref<1x8xf32, #tpu.memory_space<vmem>>, vector<1x8xf32>,
    %c1_i32 = arith.constant 1 : i32
    %23 = arith.cmpi eq, %arg1, %c1_i32 : i32
    %24 = arith.extui %23 : i1 to i32
    %c0_i32_9 = arith.constant 0 : i32
    %25 = arith.cmpi ne, %24, %c0_i32_9 : i32
    scf.if %25 {
      %c0_10 = arith.constant 0 : index
      %c0_11 = arith.constant 0 : index
      %26 = vector.load %arg4[%c0_10, %c0_11] : memref<1x8xf32, #tpu.memory_space<vmem>>, vector<1x8xf32>
      %cst_12 = arith.constant 5.000000e-01 : f32
      %27 = vector.broadcast %cst_12 : f32 to vector<1x8xf32>
      %28 = arith.mulf %26, %27 : vector<1x8xf32>
      %c0_13 = arith.constant 0 : index
      %c0_14 = arith.constant 0 : index
      %29 = vector.load %arg3[%c0_13, %c0_14] : memref<1x8xf32, #tpu.memory_space<vmem>>, vector<1x8xf32>
      tpu.vector_store %arg3[%c0_13, %c0_14], %28 {strides = array<i32>} : memref<1x8xf32, #tpu.memory_space<vmem>>, vector<1x8xf32>,
    } else {
    }
    return
  }
  func.func @transform_0(%arg0: i32, %arg1: i32) -> (i32, i32, i32) {
    %c0_i32 = arith.constant 0 : i32
    %c0_i32_0 = arith.constant 0 : i32
    return %arg1, %arg0, %c0_i32 : i32, i32, i32
  }
  func.func @transform_1(%arg0: i32, %arg1: i32) -> (i32, i32) {
    %c0_i32 = arith.constant 0 : i32
    %c0_i32_0 = arith.constant 0 : i32
    return %c0_i32, %arg0 : i32, i32
  }
}

module attributes {stable_mosaic.version = 11 : i64} {
  func.func @kernel(%arg0: i32, %arg1: i32, %arg2: memref<1x8x16xf32, #tpu.memory_space<vmem>>, %arg3: memref<8x1xf32, #tpu.memory_space<vmem>>, %arg4: memref<8x1xf32, #tpu.memory_space<vmem>>) attributes {dimension_semantics = [#tpu.dimension_semantics<parallel>, #tpu.dimension_semantics<arbitrary>], iteration_bounds = array<i64: 1, 2>, scalar_prefetch = 0 : i64, scratch_operands = 1 : i64, tpu.core_type = #tpu.core_type<tc>, window_params = [{transform_indices = @transform_0, window_bounds = array<i64: 1, 8, 16>}, {transform_indices = @transform_1, window_bounds = array<i64: 8, 1>}]} {
    %c0_i32 = arith.constant 0 : i32
    %0 = arith.cmpi eq, %arg1, %c0_i32 : i32
    %1 = arith.extui %0 : i1 to i32
    %c0_i32_0 = arith.constant 0 : i32
    %2 = arith.cmpi ne, %1, %c0_i32_0 : i32
    scf.if %2 {
      %cst_10 = arith.constant 0.000000e+00 : f32
      %25 = vector.broadcast %cst_10 : f32 to vector<8x1xf32>
      %c0_11 = arith.constant 0 : index
      %c0_12 = arith.constant 0 : index
      %26 = vector.load %arg4[%c0_11, %c0_12] : memref<8x1xf32, #tpu.memory_space<vmem>>, vector<8x1xf32>
      tpu.vector_store %arg4[%c0_11, %c0_12], %25 {strides = array<i32>} : memref<8x1xf32, #tpu.memory_space<vmem>>, vector<8x1xf32>,
    } else {
    }
    %c0 = arith.constant 0 : index
    %c0_1 = arith.constant 0 : index
    %c0_2 = arith.constant 0 : index
    %3 = vector.load %arg2[%c0, %c0_1, %c0_2] : memref<1x8x16xf32, #tpu.memory_space<vmem>>, vector<1x8x16xf32>
    %4 = vector.shape_cast %3 : vector<1x8x16xf32> to vector<8x16xf32>
    %cst = arith.constant dense<0xFF800000> : vector<8xf32>
    %5 = vector.multi_reduction <maximumf>, %4, %cst [1] : vector<8x16xf32> to vector<8xf32>
    %6 = vector.shape_cast %5 : vector<8xf32> to vector<8x1xf32>
    %7 = vector.broadcast %6 : vector<8x1xf32> to vector<8x16xf32>
    %8 = arith.subf %4, %7 : vector<8x16xf32>
    %9 = math.exp %8 : vector<8x16xf32>
    %cst_3 = arith.constant dense<0.000000e+00> : vector<8xf32>
    %10 = vector.multi_reduction <add>, %9, %cst_3 [1] : vector<8x16xf32> to vector<8xf32>
    %11 = vector.shape_cast %10 : vector<8xf32> to vector<8x1xf32>
    %12 = arith.mulf %9, %8 : vector<8x16xf32>
    %cst_4 = arith.constant dense<0.000000e+00> : vector<8xf32>
    %13 = vector.multi_reduction <add>, %12, %cst_4 [1] : vector<8x16xf32> to vector<8xf32>
    %14 = vector.shape_cast %13 : vector<8xf32> to vector<8x1xf32>
    %15 = math.log %11 : vector<8x1xf32>
    %16 = tpu.reciprocal %11 : vector<8x1xf32> -> vector<8x1xf32>
    %17 = arith.mulf %14, %16 : vector<8x1xf32>
    %18 = arith.subf %15, %17 : vector<8x1xf32>
    %c0_5 = arith.constant 0 : index
    %c0_6 = arith.constant 0 : index
    %19 = vector.load %arg4[%c0_5, %c0_6] : memref<8x1xf32, #tpu.memory_space<vmem>>, vector<8x1xf32>
    %20 = arith.addf %19, %18 : vector<8x1xf32>
    %c0_7 = arith.constant 0 : index
    %c0_8 = arith.constant 0 : index
    %21 = vector.load %arg4[%c0_7, %c0_8] : memref<8x1xf32, #tpu.memory_space<vmem>>, vector<8x1xf32>
    tpu.vector_store %arg4[%c0_7, %c0_8], %20 {strides = array<i32>} : memref<8x1xf32, #tpu.memory_space<vmem>>, vector<8x1xf32>,
    %c1_i32 = arith.constant 1 : i32
    %22 = arith.cmpi eq, %arg1, %c1_i32 : i32
    %23 = arith.extui %22 : i1 to i32
    %c0_i32_9 = arith.constant 0 : i32
    %24 = arith.cmpi ne, %23, %c0_i32_9 : i32
    scf.if %24 {
      %c0_10 = arith.constant 0 : index
      %c0_11 = arith.constant 0 : index
      %25 = vector.load %arg4[%c0_10, %c0_11] : memref<8x1xf32, #tpu.memory_space<vmem>>, vector<8x1xf32>
      %cst_12 = arith.constant 5.000000e-01 : f32
      %26 = vector.broadcast %cst_12 : f32 to vector<8x1xf32>
      %27 = arith.mulf %25, %26 : vector<8x1xf32>
      %c0_13 = arith.constant 0 : index
      %c0_14 = arith.constant 0 : index
      %28 = vector.load %arg3[%c0_13, %c0_14] : memref<8x1xf32, #tpu.memory_space<vmem>>, vector<8x1xf32>
      tpu.vector_store %arg3[%c0_13, %c0_14], %27 {strides = array<i32>} : memref<8x1xf32, #tpu.memory_space<vmem>>, vector<8x1xf32>,
    } else {
    }
    return
  }
  func.func @transform_0(%arg0: i32, %arg1: i32) -> (i32, i32, i32) {
    %c0_i32 = arith.constant 0 : i32
    %c0_i32_0 = arith.constant 0 : i32
    return %arg1, %arg0, %c0_i32 : i32, i32, i32
  }
  func.func @transform_1(%arg0: i32, %arg1: i32) -> (i32, i32) {
    %c0_i32 = arith.constant 0 : i32
    %c0_i32_0 = arith.constant 0 : i32
    return %arg0, %c0_i32 : i32, i32
  }
}

</mosaic_0001>

<llo_original>
// kernel: tpu_custom_call.1
$region0: #{tpu_custom_call.1}
  #allocation0 [shape = 'u32[]', space=smem, size = 0x4, offset = 0x4, fixed_abs, tag = 'smem constant byte address 0x4 - core index']
  #allocation1 [shape = 'u32[144,128]{1,0:T(1,128)}', space=vmem, size = 0x12000, scoped, tag = 'internal scratch']
  #allocation2 [shape = 'f32[1,8]{1,0:T(1,128)}', space=vmem, size = 0x200, scoped, tag = 'scratch operand']
  %s0 = inlined_call_operand.hbm [shape: f32[2,8,16], index: 0, kind: input, shape index: {}]
  %s1 = inlined_call_operand.hbm [shape: f32[1,8], index: 1, kind: output, shape index: {}]
  %s2 = sld [smem:[#allocation0]]
  $region49: #{tpu_custom_call.1} parent=0
    _
  %s4 = ssub.s32 1, %s2
  %s5 = scalar_select 0, %s4, %s2
  $region1: #{tpu_custom_call.1} parent=0
    #allocation3 [shape = 'u8[8192]{0}', space=vmem, size = 0x2000, scoped, tag = 'input window, operand 0']
    #allocation4 [shape = 's32[2]{0}', space=sflag, size = 0x8, scoped, tag = 'scoped memory for tpu_custom_call.1']
    #allocation5 [shape = 's32[2]{0}', space=sflag, size = 0x8, scoped, tag = 'scoped memory for tpu_custom_call.1']
    #allocation6 [shape = 'u8[512]{0}', space=vmem, size = 0x400, scoped, tag = 'output window, operand 0, single buffered']
    %6 = vsyncpa [#allocation4], 0
    %s7 = scalar_lea.sflag [#allocation4], 1
    %8 = vsyncpa %s7, 0
    %9 = vsyncpa [#allocation5], 0
    loop: start=0, step=1, limit=4
    $region2: #{tpu_custom_call.1} parent=1 // loop_pre_header
      _
    $region3: #{tpu_custom_call.1} parent=1 // loop_header
      %s11 = sphi 0, %s15
      %p12 = scmp.ge.s32.totalorder %s11, 4
      %s18 = sphi 0, %s30
      %s19 = sphi 0, %s26
      %s20 = sphi 0, %s18
      %s21 = sphi 0, %s19
      %s22 = sphi 0, %s20
      %s23 = sphi 0, %s21
      %s35 = sphi 0, %s37
      %s38 = sphi 0, %s35
      %s39 = sphi 0, %s38
      %s55 = sphi 0, %s39
      %s61 = sphi 0, %s63
      %s64 = sphi 0, %s61
      %s65 = sphi 0, %s64
      %s81 = sphi 0, %s65
    $region4: #{tpu_custom_call.1} parent=1 // loop_header_branch
      %14 = sbr.rel (%p12) target = $region8
    $region5: #{tpu_custom_call.1} parent=1 // loop_body
      %s16 = ssub.s32 %s11, 1
      %s17 = ssub.s32 %s11, 2
      %s24 = sadd.s32 1, %s19
      %p25 = scmp.ge.s32.totalorder %s24, 2
      %s26 = scalar_select %p25, 0, %s24
      %s27 = sadd.s32 1, %s18
      %s28 = scalar_select %p25, %s27, %s18
      %p29 = scmp.ge.s32.totalorder %s28, 1
      %s30 = scalar_select %p29, 0, %s28
      %s31 = ssub.s32 %s19, %s26
      %s32 = ssub.s32 %s18, %s30
      %s33 = sor.u32 %s31, %s32
      %p34 = scmp.eq.s32.totalorder %s33, 0
      %s36 = sadd.s32 %s35, 1
      %s37 = scalar_select %p34, %s35, %s36
      %p40 = pneg %p34
      %p41 = scmp.eq.s32.totalorder %s11, 1
      %p42 = por %p40, %p41
      %p43 = scmp.ne.s32.totalorder %s35, %s38
      %p44 = scmp.eq.s32.totalorder %s11, 0
      %p45 = por %p43, %p44
      %p46 = scmp.ne.s32.totalorder %s35, %s38
      %p47 = scmp.eq.s32.totalorder %s16, 1
      %p48 = por %p46, %p47
      %p49 = scmp.ne.s32.totalorder %s38, %s39
      %p50 = scmp.eq.s32.totalorder %s16, 0
      %p51 = por %p49, %p50
      %p52 = scmp.ne.s32.totalorder %s38, %s39
      %p53 = scmp.eq.s32.totalorder %s17, 1
      %p54 = por %p52, %p53
      %p56 = scmp.ne.s32.totalorder %s39, %s55
      %p57 = scmp.eq.s32.totalorder %s17, 0
      %p58 = por %p56, %p57
      %s59 = ssub.s32 %s18, %s30
      %p60 = scmp.eq.s32.totalorder %s59, 0
      %s62 = sadd.s32 %s61, 1
      %s63 = scalar_select %p60, %s61, %s62
      %p66 = pneg %p60
      %p67 = scmp.eq.s32.totalorder %s11, 1
      %p68 = por %p66, %p67
      %p69 = scmp.ne.s32.totalorder %s61, %s64
      %p70 = scmp.eq.s32.totalorder %s11, 0
      %p71 = por %p69, %p70
      %p72 = scmp.ne.s32.totalorder %s61, %s64
      %p73 = scmp.eq.s32.totalorder %s16, 1
      %p74 = por %p72, %p73
      %p75 = scmp.ne.s32.totalorder %s64, %s65
      %p76 = scmp.eq.s32.totalorder %s16, 0
      %p77 = por %p75, %p76
      %p78 = scmp.ne.s32.totalorder %s64, %s65
      %p79 = scmp.eq.s32.totalorder %s17, 1
      %p80 = por %p78, %p79
      %p82 = scmp.ne.s32.totalorder %s65, %s81
      %p83 = scmp.eq.s32.totalorder %s17, 0
      %p84 = por %p82, %p83
      %p85 = scmp.le.s32.totalorder 1, %s11
      %p86 = scmp.lt.s32.totalorder %s11, 3
      %p87 = pnand %p85, %p86
      %p88 = pneg %p87
      // Predicated region
      $region9: #{tpu_custom_call.1} parent=5 // pred_check
        _
      $region10: #{tpu_custom_call.1} parent=5 // pred_check_branch
        %90 = sbr.rel (%p87) target = $region12
      $region11: #{tpu_custom_call.1} parent=5 // pred_region
        %s91 = ssub.s32 %s11, 1
      $region12: #{tpu_custom_call.1} parent=5 // pred_fallthru
        _
      %p92 = scmp.lt.s32.totalorder %s11, 2
      // Predicated region
      $region13: #{tpu_custom_call.1} parent=5 // pred_check
        %p93 = pneg %p92
      $region14: #{tpu_custom_call.1} parent=5 // pred_check_branch
        %95 = sbr.rel (%p93) target = $region16
      $region15: #{tpu_custom_call.1} parent=5 // pred_region
        // Predicated region
        $region17: #{tpu_custom_call.1} parent=15 // pred_check
          %p96 = pneg %p45
        $region18: #{tpu_custom_call.1} parent=15 // pred_check_branch
          %98 = sbr.rel (%p96) target = $region20
        $region19: #{tpu_custom_call.1} parent=15 // pred_region
          %s99 = sand.u32 %s35, 1
          %s100 = scalar_lea.sflag [#allocation4], %s99
          %s101 = sand.u32 %s35, 1
          %s102 = smul.addr %s101, 8
          %s103 = scalar_lea.vmem [#allocation3], %s102
          %s105 = ssub.s32 128, 128
          %106 = vsyncadd %s100, %s105
          %s107 = sadd.s32 %s18, %s19
          %s108 = smul.addr %s107, 128
          %s109 = scalar_lea.hbm %s0, %s108
          %s111 = sshll.u32 %s103, 4
          %s112 = int_to_ptr.vmem [resolvable:$true] %s111
          %114 = dma.hbm_to_vmem [thread:$0]  %s109, 128, %s112, %s100
        $region20: #{tpu_custom_call.1} parent=15 // pred_fallthru
          _
      $region16: #{tpu_custom_call.1} parent=5 // pred_fallthru
        _
      %p115 = scmp.le.s32.totalorder 1, %s11
      %p116 = scmp.lt.s32.totalorder %s11, 3
      %p117 = pnand %p115, %p116
      %p118 = pneg %p117
      // Predicated region
      $region21: #{tpu_custom_call.1} parent=5 // pred_check
        _
      $region22: #{tpu_custom_call.1} parent=5 // pred_check_branch
        %120 = sbr.rel (%p117) target = $region24
      $region23: #{tpu_custom_call.1} parent=5 // pred_region
        %s121 = ssub.s32 %s11, 1
        %s122 = sand.u32 %s38, 1
        %s123 = scalar_lea.sflag [#allocation4], %s122
        %s124 = sand.u32 %s38, 1
        %s125 = smul.addr %s124, 8
        %s126 = scalar_lea.vmem [#allocation3], %s125
        // Predicated region
        $region25: #{tpu_custom_call.1} parent=23 // pred_check
          %p127 = pneg %p51
        $region26: #{tpu_custom_call.1} parent=23 // pred_check_branch
          %129 = sbr.rel (%p127) target = $region28
        $region27: #{tpu_custom_call.1} parent=23 // pred_region
          %130 = dma.done %s123, 128
        $region28: #{tpu_custom_call.1} parent=23 // pred_fallthru
          _
        %s131 = sand.u32 %s38, 1
        %s132 = scalar_lea.sflag [#allocation4], %s131
        %s133 = sand.u32 %s38, 1
        %s134 = smul.addr %s133, 8
        %s135 = scalar_lea.vmem [#allocation3], %s134
        %p136 = pneg %p51
        %p137 = pneg %p48
        %p138 = pneg %p77
        %p139 = pneg %p74
        %p140 = scmp.eq.s32.totalorder %s21, 0
        // Predicated region
        $region29: #{tpu_custom_call.1} parent=23 // pred_check
          %p141 = pneg %p140
        $region30: #{tpu_custom_call.1} parent=23 // pred_check_branch
          %143 = sbr.rel (%p141) target = $region32
        $region31: #{tpu_custom_call.1} parent=23 // pred_region
          %vm144 = vcmask 57344
          %145 = vst.msk [vmem:[#allocation2] sm:$0x1] %vm144, 0.0
        $region32: #{tpu_custom_call.1} parent=23 // pred_fallthru
          _
        %v146 = vld [vmem:[%s126] sm:$0xff]
        %147 = vxpose.xlu0.b32.start [1/16] %v146, 128
        %148 = vxpose.xlu0.b32.cont [2/16] 0.0, 128
        %149 = vxpose.xlu0.b32.cont [3/16] 0.0, 128
        %150 = vxpose.xlu0.b32.cont [4/16] 0.0, 128
        %151 = vxpose.xlu0.b32.cont [5/16] 0.0, 128
        %152 = vxpose.xlu0.b32.cont [6/16] 0.0, 128
        %153 = vxpose.xlu0.b32.cont [7/16] 0.0, 128
        %154 = vxpose.xlu0.b32.cont [8/16] 0.0, 128
        %155 = vxpose.xlu0.b32.cont [9/16] 0.0, 128
        %156 = vxpose.xlu0.b32.cont [10/16] 0.0, 128
        %157 = vxpose.xlu0.b32.cont [11/16] 0.0, 128
        %158 = vxpose.xlu0.b32.cont [12/16] 0.0, 128
        %159 = vxpose.xlu0.b32.cont [13/16] 0.0, 128
        %160 = vxpose.xlu0.b32.cont [14/16] 0.0, 128
        %161 = vxpose.xlu0.b32.cont [15/16] 0.0, 128
        %162 = vxpose.xlu0.b32.end [16/16] 0.0, 128
        %v163 = vpop.trf.xlu0
        %v164 = vpop.trf.xlu0
        %v165 = vpop.trf.xlu0
        %v166 = vpop.trf.xlu0
        %v167 = vpop.trf.xlu0
        %v168 = vpop.trf.xlu0
        %v169 = vpop.trf.xlu0
        %v170 = vpop.trf.xlu0
        %v171 = vpop.trf.xlu0
        %v172 = vpop.trf.xlu0
        %v173 = vpop.trf.xlu0
        %v174 = vpop.trf.xlu0
        %v175 = vpop.trf.xlu0
        %v176 = vpop.trf.xlu0
        %v177 = vpop.trf.xlu0
        %v178 = vpop.trf.xlu0
        %vm179 = vcmask 64512
        %v180 = vsel %vm179, %v163, -inf
        %v181 = vsel %vm179, %v164, -inf
        %v182 = vmax.f32 %v180, %v181
        %v183 = vrot.slane %v182, 4
        %v184 = vmax.f32 %v182, %v183
        %v185 = vrot.slane %v184, 2
        %v186 = vmax.f32 %v184, %v185
        %v187 = vrot.slane %v186, 1
        %v188 = vmax.f32 %v186, %v187
        %v189 = vsub.f32 %v163, %v188
        %v190 = vsub.f32 %v164, %v188
        %v191 = vmul.f32 %v189, 1.442695
        %v192 = vpow.pop %v191
        %v193 = vmul.f32 %v190, 1.442695
        %v194 = vpow.pop %v193
        %v195 = vsel %vm179, %v192, 0.0
        %v196 = vsel %vm179, %v194, 0.0
        %v197 = vadd.f32 %v195, %v196
        %v198 = vrot.slane %v197, 4
        %v199 = vadd.f32 %v197, %v198
        %v200 = vrot.slane %v199, 2
        %v201 = vadd.f32 %v199, %v200
        %v202 = vrot.slane %v201, 1
        %v203 = vadd.f32 %v201, %v202
        %v204 = vmul.f32 %v192, %v189
        %v205 = vmul.f32 %v194, %v190
        %v206 = vsel %vm179, %v204, 0.0
        %v207 = vsel %vm179, %v205, 0.0
        %v208 = vadd.f32 %v206, %v207
        %v209 = vrot.slane %v208, 4
        %v210 = vadd.f32 %v208, %v209
        %v211 = vrot.slane %v210, 2
        %v212 = vadd.f32 %v210, %v211
        %v213 = vrot.slane %v212, 1
        %v214 = vadd.f32 %v212, %v213
        %v215 = vlog2.pop %v203
        %v216 = vmul.f32 %v215, 0.6931472
        %v217 = vrcp.pop %v203
        %v218 = vmul.f32 %v214, %v217
        %v219 = vsub.f32 %v216, %v218
        %v220 = vld [vmem:[#allocation2] sm:$0x1]
        %v221 = vadd.f32 %v220, %v219
        %vm222 = vcmask 57344
        %223 = vst.msk [vmem:[#allocation2] sm:$0x1] %vm222, %v221
        %p224 = scmp.eq.s32.totalorder %s21, 1
        // Predicated region
        $region33: #{tpu_custom_call.1} parent=23 // pred_check
          %p225 = pneg %p224
        $region34: #{tpu_custom_call.1} parent=23 // pred_check_branch
          %227 = sbr.rel (%p225) target = $region36
        $region35: #{tpu_custom_call.1} parent=23 // pred_region
          %v228 = vld [vmem:[#allocation2] sm:$0x1]
          %v229 = vmul.f32 %v228, 0.5
          %230 = vst.msk [vmem:[#allocation6] sm:$0x1] %vm222, %v229
        $region36: #{tpu_custom_call.1} parent=23 // pred_fallthru
          _
        // Predicated region
        $region37: #{tpu_custom_call.1} parent=23 // pred_check
          %p231 = pneg %p74
        $region38: #{tpu_custom_call.1} parent=23 // pred_check_branch
          %233 = sbr.rel (%p231) target = $region40
        $region39: #{tpu_custom_call.1} parent=23 // pred_region
          %s235 = ssub.s32 16, 16
          %236 = vsyncadd [#allocation5], %s235
          %s237 = smul.addr %s20, 16
          %s238 = scalar_lea.hbm %s1, %s237
          %s240 = sshll.u32 [#allocation6], 4
          %s241 = int_to_ptr.vmem [resolvable:$true] %s240
          %243 = dma.vmem_to_hbm [thread:$0]  %s241, 16, %s238, [#allocation5]
        $region40: #{tpu_custom_call.1} parent=23 // pred_fallthru
          _
        // Predicated region
        $region41: #{tpu_custom_call.1} parent=23 // pred_check
          %p244 = pneg %p74
        $region42: #{tpu_custom_call.1} parent=23 // pred_check_branch
          %246 = sbr.rel (%p244) target = $region44
        $region43: #{tpu_custom_call.1} parent=23 // pred_region
          %247 = dma.done [#allocation5], 16
        $region44: #{tpu_custom_call.1} parent=23 // pred_fallthru
          _
      $region24: #{tpu_custom_call.1} parent=5 // pred_fallthru
        _
      %p248 = scmp.le.s32.totalorder 2, %s11
      // Predicated region
      $region45: #{tpu_custom_call.1} parent=5 // pred_check
        %p249 = pneg %p248
      $region46: #{tpu_custom_call.1} parent=5 // pred_check_branch
        %251 = sbr.rel (%p249) target = $region48
      $region47: #{tpu_custom_call.1} parent=5 // pred_region
        %s252 = ssub.s32 %s11, 2
      $region48: #{tpu_custom_call.1} parent=5 // pred_fallthru
        _
    $region6: #{tpu_custom_call.1} parent=1 // loop_footer
      %s15 = sadd.s32 1, %s11
    $region7: #{tpu_custom_call.1} parent=1 // loop_footer_branch
      %10 = sbr.rel target = $region3
    $region8: #{tpu_custom_call.1} parent=1 // loop_exit
      _
    %253 = vsyncpa [#allocation4], 1
    %s254 = scalar_lea.sflag [#allocation4], 1
    %255 = vsyncpa %s254, 1
    %256 = vsyncpa [#allocation5], 1
    %s257 = scalar_lea.sflag [#allocation5], 1
    %258 = vsyncpa %s257, 1

// kernel: tpu_custom_call.1
$region0: #{tpu_custom_call.1}
  #allocation0 [shape = 'u32[]', space=smem, size = 0x4, offset = 0x4, fixed_abs, tag = 'smem constant byte address 0x4 - core index']
  #allocation1 [shape = 'u32[144,128]{1,0:T(1,128)}', space=vmem, size = 0x12000, scoped, tag = 'internal scratch']
  #allocation2 [shape = 'f32[8,1]{1,0:T(8,128)}', space=vmem, size = 0x1000, scoped, tag = 'scratch operand']
  %s0 = inlined_call_operand.hbm [shape: f32[2,8,16], index: 0, kind: input, shape index: {}]
  %s1 = inlined_call_operand.vmem [shape: f32[8,1], index: 1, kind: output, shape index: {}]
  %s2 = sld [smem:[#allocation0]]
  $region49: #{tpu_custom_call.1} parent=0
    _
  %s4 = ssub.s32 1, %s2
  %s5 = scalar_select 0, %s4, %s2
  $region1: #{tpu_custom_call.1} parent=0
    #allocation3 [shape = 'u8[8192]{0}', space=vmem, size = 0x2000, scoped, tag = 'input window, operand 0']
    #allocation4 [shape = 's32[2]{0}', space=sflag, size = 0x8, scoped, tag = 'scoped memory for tpu_custom_call.1']
    %6 = vsyncpa [#allocation4], 0
    %s7 = scalar_lea.sflag [#allocation4], 1
    %8 = vsyncpa %s7, 0
    loop: start=0, step=1, limit=4
    $region2: #{tpu_custom_call.1} parent=1 // loop_pre_header
      _
    $region3: #{tpu_custom_call.1} parent=1 // loop_header
      %s10 = sphi 0, %s14
      %p11 = scmp.ge.s32.totalorder %s10, 4
      %s17 = sphi 0, %s29
      %s18 = sphi 0, %s25
      %s19 = sphi 0, %s17
      %s20 = sphi 0, %s18
      %s21 = sphi 0, %s19
      %s22 = sphi 0, %s20
      %s34 = sphi 0, %s36
      %s37 = sphi 0, %s34
      %s38 = sphi 0, %s37
      %s54 = sphi 0, %s38
      %s60 = sphi 0, %s62
      %s63 = sphi 0, %s60
      %s64 = sphi 0, %s63
      %s80 = sphi 0, %s64
    $region4: #{tpu_custom_call.1} parent=1 // loop_header_branch
      %13 = sbr.rel (%p11) target = $region8
    $region5: #{tpu_custom_call.1} parent=1 // loop_body
      %s15 = ssub.s32 %s10, 1
      %s16 = ssub.s32 %s10, 2
      %s23 = sadd.s32 1, %s18
      %p24 = scmp.ge.s32.totalorder %s23, 2
      %s25 = scalar_select %p24, 0, %s23
      %s26 = sadd.s32 1, %s17
      %s27 = scalar_select %p24, %s26, %s17
      %p28 = scmp.ge.s32.totalorder %s27, 1
      %s29 = scalar_select %p28, 0, %s27
      %s30 = ssub.s32 %s18, %s25
      %s31 = ssub.s32 %s17, %s29
      %s32 = sor.u32 %s30, %s31
      %p33 = scmp.eq.s32.totalorder %s32, 0
      %s35 = sadd.s32 %s34, 1
      %s36 = scalar_select %p33, %s34, %s35
      %p39 = pneg %p33
      %p40 = scmp.eq.s32.totalorder %s10, 1
      %p41 = por %p39, %p40
      %p42 = scmp.ne.s32.totalorder %s34, %s37
      %p43 = scmp.eq.s32.totalorder %s10, 0
      %p44 = por %p42, %p43
      %p45 = scmp.ne.s32.totalorder %s34, %s37
      %p46 = scmp.eq.s32.totalorder %s15, 1
      %p47 = por %p45, %p46
      %p48 = scmp.ne.s32.totalorder %s37, %s38
      %p49 = scmp.eq.s32.totalorder %s15, 0
      %p50 = por %p48, %p49
      %p51 = scmp.ne.s32.totalorder %s37, %s38
      %p52 = scmp.eq.s32.totalorder %s16, 1
      %p53 = por %p51, %p52
      %p55 = scmp.ne.s32.totalorder %s38, %s54
      %p56 = scmp.eq.s32.totalorder %s16, 0
      %p57 = por %p55, %p56
      %s58 = ssub.s32 %s17, %s29
      %p59 = scmp.eq.s32.totalorder %s58, 0
      %s61 = sadd.s32 %s60, 1
      %s62 = scalar_select %p59, %s60, %s61
      %p65 = pneg %p59
      %p66 = scmp.eq.s32.totalorder %s10, 1
      %p67 = por %p65, %p66
      %p68 = scmp.ne.s32.totalorder %s60, %s63
      %p69 = scmp.eq.s32.totalorder %s10, 0
      %p70 = por %p68, %p69
      %p71 = scmp.ne.s32.totalorder %s60, %s63
      %p72 = scmp.eq.s32.totalorder %s15, 1
      %p73 = por %p71, %p72
      %p74 = scmp.ne.s32.totalorder %s63, %s64
      %p75 = scmp.eq.s32.totalorder %s15, 0
      %p76 = por %p74, %p75
      %p77 = scmp.ne.s32.totalorder %s63, %s64
      %p78 = scmp.eq.s32.totalorder %s16, 1
      %p79 = por %p77, %p78
      %p81 = scmp.ne.s32.totalorder %s64, %s80
      %p82 = scmp.eq.s32.totalorder %s16, 0
      %p83 = por %p81, %p82
      %p84 = scmp.le.s32.totalorder 1, %s10
      %p85 = scmp.lt.s32.totalorder %s10, 3
      %p86 = pnand %p84, %p85
      %p87 = pneg %p86
      // Predicated region
      $region9: #{tpu_custom_call.1} parent=5 // pred_check
        _
      $region10: #{tpu_custom_call.1} parent=5 // pred_check_branch
        %89 = sbr.rel (%p86) target = $region12
      $region11: #{tpu_custom_call.1} parent=5 // pred_region
        %s90 = ssub.s32 %s10, 1
      $region12: #{tpu_custom_call.1} parent=5 // pred_fallthru
        _
      %p91 = scmp.lt.s32.totalorder %s10, 2
      // Predicated region
      $region13: #{tpu_custom_call.1} parent=5 // pred_check
        %p92 = pneg %p91
      $region14: #{tpu_custom_call.1} parent=5 // pred_check_branch
        %94 = sbr.rel (%p92) target = $region16
      $region15: #{tpu_custom_call.1} parent=5 // pred_region
        // Predicated region
        $region17: #{tpu_custom_call.1} parent=15 // pred_check
          %p95 = pneg %p44
        $region18: #{tpu_custom_call.1} parent=15 // pred_check_branch
          %97 = sbr.rel (%p95) target = $region20
        $region19: #{tpu_custom_call.1} parent=15 // pred_region
          %s98 = sand.u32 %s34, 1
          %s99 = scalar_lea.sflag [#allocation4], %s98
          %s100 = sand.u32 %s34, 1
          %s101 = smul.addr %s100, 8
          %s102 = scalar_lea.vmem [#allocation3], %s101
          %s104 = ssub.s32 128, 128
          %105 = vsyncadd %s99, %s104
          %s106 = sadd.s32 %s17, %s18
          %s107 = smul.addr %s106, 128
          %s108 = scalar_lea.hbm %s0, %s107
          %s110 = sshll.u32 %s102, 4
          %s111 = int_to_ptr.vmem [resolvable:$true] %s110
          %113 = dma.hbm_to_vmem [thread:$0]  %s108, 128, %s111, %s99
        $region20: #{tpu_custom_call.1} parent=15 // pred_fallthru
          _
      $region16: #{tpu_custom_call.1} parent=5 // pred_fallthru
        _
      %p114 = scmp.le.s32.totalorder 1, %s10
      %p115 = scmp.lt.s32.totalorder %s10, 3
      %p116 = pnand %p114, %p115
      %p117 = pneg %p116
      // Predicated region
      $region21: #{tpu_custom_call.1} parent=5 // pred_check
        _
      $region22: #{tpu_custom_call.1} parent=5 // pred_check_branch
        %119 = sbr.rel (%p116) target = $region24
      $region23: #{tpu_custom_call.1} parent=5 // pred_region
        %s120 = ssub.s32 %s10, 1
        %s121 = sand.u32 %s37, 1
        %s122 = scalar_lea.sflag [#allocation4], %s121
        %s123 = sand.u32 %s37, 1
        %s124 = smul.addr %s123, 8
        %s125 = scalar_lea.vmem [#allocation3], %s124
        // Predicated region
        $region25: #{tpu_custom_call.1} parent=23 // pred_check
          %p126 = pneg %p50
        $region26: #{tpu_custom_call.1} parent=23 // pred_check_branch
          %128 = sbr.rel (%p126) target = $region28
        $region27: #{tpu_custom_call.1} parent=23 // pred_region
          %129 = dma.done %s122, 128
        $region28: #{tpu_custom_call.1} parent=23 // pred_fallthru
          _
        %s130 = sand.u32 %s37, 1
        %s131 = scalar_lea.sflag [#allocation4], %s130
        %s132 = sand.u32 %s37, 1
        %s133 = smul.addr %s132, 8
        %s134 = scalar_lea.vmem [#allocation3], %s133
        %p135 = pneg %p50
        %p136 = pneg %p47
        %p137 = pneg %p76
        %p138 = pneg %p73
        %p139 = scmp.lt.s32.totalorder %s19, 0
        %s140 = scalar_select %p139, %s19, 0
        %s141 = smul.addr %s140, 8
        %s142 = scalar_lea.vmem %s1, %s141
        %p143 = scmp.lt.s32.totalorder %s19, 0
        %s144 = scalar_select %p143, %s19, 0
        %s145 = smul.addr %s144, 8
        %s146 = scalar_lea.vmem %s1, %s145
        %p147 = scmp.eq.s32.totalorder %s20, 0
        // Predicated region
        $region29: #{tpu_custom_call.1} parent=23 // pred_check
          %p148 = pneg %p147
        $region30: #{tpu_custom_call.1} parent=23 // pred_check_branch
          %150 = sbr.rel (%p148) target = $region32
        $region31: #{tpu_custom_call.1} parent=23 // pred_region
          %vm151 = vcmask 7168
          %152 = vst.msk [vmem:[#allocation2] sm:$0xff] %vm151, 0.0
        $region32: #{tpu_custom_call.1} parent=23 // pred_fallthru
          _
        %v153 = vld [vmem:[%s125] sm:$0xff]
        %vm154 = vcmask 130048
        %v155 = vsel %vm154, %v153, -inf
        %156 = vmax.xlane.f32.xlu0 %v155
        %v157 = vpop.xlane.xlu0 %156
        %v158 = vsub.f32 %v153, %v157
        %v159 = vmul.f32 %v158, 1.442695
        %v160 = vpow.pop %v159
        %v161 = vsel %vm154, %v160, 0.0
        %162 = vadd.xlane.f32.xlu0 %v161
        %v163 = vpop.xlane.xlu0 %162
        %v164 = vmul.f32 %v160, %v158
        %v165 = vsel %vm154, %v164, 0.0
        %166 = vadd.xlane.f32.xlu0 %v165
        %v167 = vpop.xlane.xlu0 %166
        %v168 = vlog2.pop %v163
        %v169 = vmul.f32 %v168, 0.6931472
        %v170 = vrcp.pop %v163
        %v171 = vmul.f32 %v167, %v170
        %v172 = vsub.f32 %v169, %v171
        %v173 = vld [vmem:[#allocation2] sm:$0xff]
        %v174 = vadd.f32 %v173, %v172
        %vm175 = vcmask 7168
        %176 = vst.msk [vmem:[#allocation2] sm:$0xff] %vm175, %v174
        %p177 = scmp.eq.s32.totalorder %s20, 1
        // Predicated region
        $region33: #{tpu_custom_call.1} parent=23 // pred_check
          %p178 = pneg %p177
        $region34: #{tpu_custom_call.1} parent=23 // pred_check_branch
          %180 = sbr.rel (%p178) target = $region36
        $region35: #{tpu_custom_call.1} parent=23 // pred_region
          %v181 = vld [vmem:[#allocation2] sm:$0xff]
          %v182 = vmul.f32 %v181, 0.5
          %183 = vst.msk [vmem:[%s146] sm:$0xff] %vm175, %v182
        $region36: #{tpu_custom_call.1} parent=23 // pred_fallthru
          _
        %p184 = scmp.lt.s32.totalorder %s19, 0
        %s185 = scalar_select %p184, %s19, 0
        %s186 = smul.addr %s185, 8
        %s187 = scalar_lea.vmem %s1, %s186
        // Predicated region
        $region37: #{tpu_custom_call.1} parent=23 // pred_check
          %p188 = pneg %p73
        $region38: #{tpu_custom_call.1} parent=23 // pred_check_branch
          %190 = sbr.rel (%p188) target = $region40
        $region39: #{tpu_custom_call.1} parent=23 // pred_region
          _
        $region40: #{tpu_custom_call.1} parent=23 // pred_fallthru
          _
        // Predicated region
        $region41: #{tpu_custom_call.1} parent=23 // pred_check
          %p191 = pneg %p73
        $region42: #{tpu_custom_call.1} parent=23 // pred_check_branch
          %193 = sbr.rel (%p191) target = $region44
        $region43: #{tpu_custom_call.1} parent=23 // pred_region
          %p194 = scmp.lt.s32.totalorder %s19, 0
          %s195 = scalar_select %p194, %s19, 0
          %s196 = smul.addr %s195, 8
          %s197 = scalar_lea.vmem %s1, %s196
        $region44: #{tpu_custom_call.1} parent=23 // pred_fallthru
          _
      $region24: #{tpu_custom_call.1} parent=5 // pred_fallthru
        _
      %p198 = scmp.le.s32.totalorder 2, %s10
      // Predicated region
      $region45: #{tpu_custom_call.1} parent=5 // pred_check
        %p199 = pneg %p198
      $region46: #{tpu_custom_call.1} parent=5 // pred_check_branch
        %201 = sbr.rel (%p199) target = $region48
      $region47: #{tpu_custom_call.1} parent=5 // pred_region
        %s202 = ssub.s32 %s10, 2
      $region48: #{tpu_custom_call.1} parent=5 // pred_fallthru
        _
    $region6: #{tpu_custom_call.1} parent=1 // loop_footer
      %s14 = sadd.s32 1, %s10
    $region7: #{tpu_custom_call.1} parent=1 // loop_footer_branch
      %9 = sbr.rel target = $region3
    $region8: #{tpu_custom_call.1} parent=1 // loop_exit
      _
    %203 = vsyncpa [#allocation4], 1
    %s204 = scalar_lea.sflag [#allocation4], 1
    %205 = vsyncpa %s204, 1

</llo_original>
